<compile_context>
chip_gen: v7x
topology: tpu7x:2x2x1
jax: 0.10.0
libtpu: 0.0.40
codegen_flags: <defaults>
</compile_context>

<pallas_src>
import jax
import jax.numpy as jnp
from jax import lax
from jax.experimental import pallas as pl
from jax.experimental.pallas import tpu as pltpu


_VMEM = pl.BlockSpec(memory_space=pltpu.MemorySpace.VMEM)
_SMEM = pl.BlockSpec(memory_space=pltpu.MemorySpace.SMEM)


def _linear_rowsum(x, w_row, b_scalar):
    # out[i] = sum_k x[i,k] * w[0,k] + b  — VPU multiply + lane reduce, no MXU.
    return jnp.sum(x * w_row, axis=-1, keepdims=True) + b_scalar


def linear_kernel(x_ref, w_ref, b_ref, out_ref):
    # x: (B, IN) VMEM, w: (1, IN) VMEM, b: (1,1) SMEM scalar, out: (B, 1) VMEM
    out_ref[...] = _linear_rowsum(x_ref[...], w_ref[...], b_ref[0, 0])


def fused_linear_ce_kernel(x_ref, w_ref, y_ref, b_ref, logits_ref, loss_ref):
    # x: (B, IN) VMEM, w: (1, IN) VMEM, y: (B, 1) int32 VMEM, b: (1,1) SMEM
    # logits: (B, 1) VMEM, loss: (1, 1) VMEM (mean CE over batch)
    B, C = logits_ref.shape
    logits = _linear_rowsum(x_ref[...], w_ref[...], b_ref[0, 0])      # (B, C)
    logits_ref[...] = logits

    # Numerically-stable cross-entropy with mean reduction, identical
    # semantics to nn.CrossEntropyLoss()(logits, y).
    m = jnp.max(logits, axis=-1, keepdims=True)
    lse = m + jnp.log(jnp.sum(jnp.exp(logits - m), axis=-1, keepdims=True))
    class_ids = lax.broadcasted_iota(jnp.int32, (B, C), 1)
    onehot = (class_ids == y_ref[...]).astype(jnp.float32)            # in-kernel mask
    picked = jnp.sum(logits * onehot, axis=-1, keepdims=True)
    nll = lse - picked                                                # (B, 1)
    loss_ref[...] = jnp.sum(nll, axis=0, keepdims=True) * (1.0 / B)


def mock_model_forward(x, w, b, y=None):
    """Equivalent of MockModel.forward.

    x: (B, 10) f32
    w: (1, 10) f32   (nn.Linear(10, 1) weight, PyTorch (OUT, IN) layout)
    b: (1,)    f32   (Linear bias)
    y: optional (B,) int class indices
    returns (logits (B, 1) f32, loss scalar f32 or None)
    """
    x = x.astype(jnp.float32)
    B = x.shape[0]
    OUT = w.shape[0]
    b2d = jnp.asarray(b, jnp.float32).reshape(1, 1)

    if y is None:
        logits = pl.pallas_call(
            linear_kernel,
            out_shape=jax.ShapeDtypeStruct((B, OUT), jnp.float32),
            in_specs=[_VMEM, _VMEM, _SMEM],
            out_specs=_VMEM,
        )(x, w, b2d)
        return logits, None

    y2d = jnp.asarray(y, jnp.int32).reshape(B, 1)
    logits, loss = pl.pallas_call(
        fused_linear_ce_kernel,
        out_shape=(
            jax.ShapeDtypeStruct((B, OUT), jnp.float32),
            jax.ShapeDtypeStruct((1, 1), jnp.float32),
        ),
        in_specs=[_VMEM, _VMEM, _VMEM, _SMEM],
        out_specs=(_VMEM, _VMEM),
    )(x, w, y2d, b2d)
    return logits, loss[0, 0]


if __name__ == "__main__":
    B, IN, OUT = 8, 10, 1

    key = jax.random.PRNGKey(0)
    kx, kw, kb = jax.random.split(key, 3)

    # Deterministic parameter init (shapes from nn.Linear(10, 1)).
    bound = 1.0 / jnp.sqrt(IN)
    w = jax.random.uniform(kw, (OUT, IN), jnp.float32, -bound, bound)   # (1, 10)
    b = jax.random.uniform(kb, (OUT,), jnp.float32, -bound, bound)      # (1,)

    x = jax.random.normal(kx, (B, IN), jnp.float32)
    # With a single output class, the only valid targets are class 0.
    y = jnp.zeros((B,), dtype=jnp.int32)

    logits, loss = mock_model_forward(x, w, b, y)
    logits = jax.block_until_ready(logits)
    loss = jax.block_until_ready(loss)

    # Sanity check against a pure-JAX reference.
    ref_logits = x @ w.T + b
    ref_lse = jax.scipy.special.logsumexp(ref_logits, axis=-1)
    ref_loss = jnp.mean(ref_lse - ref_logits[jnp.arange(B), y])
    assert jnp.allclose(logits, ref_logits, atol=1e-5), "logits mismatch"
    assert jnp.allclose(loss, ref_loss, atol=1e-5), "loss mismatch"

    # Also exercise the y=None path (loss must be None).
    logits_only, no_loss = mock_model_forward(x, w, b, None)
    jax.block_until_ready(logits_only)
    assert no_loss is None
    assert jnp.allclose(logits_only, ref_logits, atol=1e-5), "logits-only mismatch"

    print("KERNEL_OK")
</pallas_src>

<mosaic_0001>
module attributes {stable_mosaic.version = 11 : i64} {
  func.func @fused_linear_ce_kernel(%arg0: memref<8x10xf32, #tpu.memory_space<vmem>>, %arg1: memref<1x10xf32, #tpu.memory_space<vmem>>, %arg2: memref<8x1xi32, #tpu.memory_space<vmem>>, %arg3: memref<1x1xf32, #tpu.memory_space<smem>>, %arg4: memref<8x1xf32, #tpu.memory_space<vmem>>, %arg5: memref<1x1xf32, #tpu.memory_space<vmem>>) attributes {dimension_semantics = [], scalar_prefetch = 0 : i64, scratch_operands = 0 : i64, tpu.core_type = #tpu.core_type<tc>} {
    %c0 = arith.constant 0 : index
    %c0_0 = arith.constant 0 : index
    %0 = vector.load %arg0[%c0, %c0_0] : memref<8x10xf32, #tpu.memory_space<vmem>>, vector<8x10xf32>
    %c0_1 = arith.constant 0 : index
    %c0_2 = arith.constant 0 : index
    %1 = vector.load %arg1[%c0_1, %c0_2] : memref<1x10xf32, #tpu.memory_space<vmem>>, vector<1x10xf32>
    %c0_3 = arith.constant 0 : index
    %c0_4 = arith.constant 0 : index
    %2 = memref.load %arg3[%c0_3, %c0_4] : memref<1x1xf32, #tpu.memory_space<smem>>
    %3 = vector.broadcast %1 : vector<1x10xf32> to vector<8x10xf32>
    %4 = arith.mulf %0, %3 : vector<8x10xf32>
    %cst = arith.constant dense<0.000000e+00> : vector<8xf32>
    %5 = vector.multi_reduction <add>, %4, %cst [1] : vector<8x10xf32> to vector<8xf32>
    %6 = vector.shape_cast %5 : vector<8xf32> to vector<8x1xf32>
    %7 = vector.broadcast %2 : f32 to vector<8x1xf32>
    %8 = arith.addf %6, %7 : vector<8x1xf32>
    %c0_5 = arith.constant 0 : index
    %c0_6 = arith.constant 0 : index
    %9 = vector.load %arg4[%c0_5, %c0_6] : memref<8x1xf32, #tpu.memory_space<vmem>>, vector<8x1xf32>
    tpu.vector_store %arg4[%c0_5, %c0_6], %8 {strides = array<i32>} : memref<8x1xf32, #tpu.memory_space<vmem>>, vector<8x1xf32>,
    %cst_7 = arith.constant dense<0xFF800000> : vector<8xf32>
    %10 = vector.multi_reduction <maximumf>, %8, %cst_7 [1] : vector<8x1xf32> to vector<8xf32>
    %11 = vector.shape_cast %10 : vector<8xf32> to vector<8x1xf32>
    %12 = arith.subf %8, %11 : vector<8x1xf32>
    %13 = math.exp %12 : vector<8x1xf32>
    %cst_8 = arith.constant dense<0.000000e+00> : vector<8xf32>
    %14 = vector.multi_reduction <add>, %13, %cst_8 [1] : vector<8x1xf32> to vector<8xf32>
    %15 = vector.shape_cast %14 : vector<8xf32> to vector<8x1xf32>
    %16 = math.log %15 : vector<8x1xf32>
    %17 = arith.addf %11, %16 : vector<8x1xf32>
    %18 = tpu.iota {dimensions = array<i32: 1>} : vector<8x1xi32>
    %c0_9 = arith.constant 0 : index
    %c0_10 = arith.constant 0 : index
    %19 = vector.load %arg2[%c0_9, %c0_10] : memref<8x1xi32, #tpu.memory_space<vmem>>, vector<8x1xi32>
    %20 = arith.cmpi eq, %18, %19 : vector<8x1xi32>
    %21 = arith.extui %20 : vector<8x1xi1> to vector<8x1xi32>
    %22 = arith.sitofp %21 : vector<8x1xi32> to vector<8x1xf32>
    %23 = arith.mulf %8, %22 : vector<8x1xf32>
    %cst_11 = arith.constant dense<0.000000e+00> : vector<8xf32>
    %24 = vector.multi_reduction <add>, %23, %cst_11 [1] : vector<8x1xf32> to vector<8xf32>
    %25 = vector.shape_cast %24 : vector<8xf32> to vector<8x1xf32>
    %26 = arith.subf %17, %25 : vector<8x1xf32>
    %cst_12 = arith.constant dense<0.000000e+00> : vector<1xf32>
    %27 = vector.multi_reduction <add>, %26, %cst_12 [0] : vector<8x1xf32> to vector<1xf32>
    %28 = vector.shape_cast %27 : vector<1xf32> to vector<1x1xf32>
    %cst_13 = arith.constant 1.250000e-01 : f32
    %29 = vector.broadcast %cst_13 : f32 to vector<1x1xf32>
    %30 = arith.mulf %28, %29 : vector<1x1xf32>
    %c0_14 = arith.constant 0 : index
    %c0_15 = arith.constant 0 : index
    %31 = vector.load %arg5[%c0_14, %c0_15] : memref<1x1xf32, #tpu.memory_space<vmem>>, vector<1x1xf32>
    tpu.vector_store %arg5[%c0_14, %c0_15], %30 {strides = array<i32>} : memref<1x1xf32, #tpu.memory_space<vmem>>, vector<1x1xf32>,
    return
  }
}

</mosaic_0001>

<llo_original>
// kernel: tpu_custom_call.1
$region0: #{tpu_custom_call.1}
  #allocation0 [shape = 'u32[]', space=smem, size = 0x4, offset = 0x4, fixed_abs, tag = 'smem constant byte address 0x4 - core index']
  #allocation1 [shape = 'u32[144,128]{1,0:T(1,128)}', space=vmem, size = 0x12000, scoped, tag = 'internal scratch']
  #allocation2 [shape = 'f32[1,1]{1,0:T(1,128)S(6)}', space=smem, size = 0x200, scoped, tag = 'scoped memory for tpu_custom_call.1']
  %s0 = inlined_call_operand.vmem [shape: f32[8,10], index: 0, kind: input, shape index: {}]
  %s1 = inlined_call_operand.vmem [shape: f32[1,10], index: 1, kind: input, shape index: {}]
  %s2 = inlined_call_operand.vmem [shape: s32[8,1], index: 2, kind: input, shape index: {}]
  %s3 = inlined_call_operand.<no memory space> [shape: f32[1,1], index: 3, kind: input, shape index: {}]
  %s4 = inlined_call_operand.vmem [shape: f32[8,1], index: 4, kind: output, shape index: {0}]
  %s5 = inlined_call_operand.hbm [shape: f32[1,1], index: 5, kind: output, shape index: {1}]
  %6 = xla_tuple %s4, %s5
  %s7 = sld [smem:[#allocation0]]
  $region34: #{tpu_custom_call.1} parent=0
    _
  %s9 = ssub.s32 1, %s7
  %s10 = scalar_select 0, %s9, %s7
  %11 = sst [smem:[#allocation2]] %s3
  $region1: #{tpu_custom_call.1} parent=0
    #allocation3 [shape = 'u8[512]{0}', space=vmem, size = 0x400, scoped, tag = 'output window, operand 1, single buffered']
    #allocation4 [shape = 's32[1]{0}', space=sflag, size = 0x4, scoped, tag = 'scoped memory for tpu_custom_call.1']
    %12 = vsyncpa [#allocation4], 0
    // Predicated region
    $region2: #{tpu_custom_call.1} parent=1 // pred_check
      _
    $region3: #{tpu_custom_call.1} parent=1 // pred_check_branch
      %14 = sbr.rel (0) target = $region5
    $region4: #{tpu_custom_call.1} parent=1 // pred_region
      _
    $region5: #{tpu_custom_call.1} parent=1 // pred_fallthru
      _
    // Predicated region
    $region6: #{tpu_custom_call.1} parent=1 // pred_check
      _
    $region7: #{tpu_custom_call.1} parent=1 // pred_check_branch
      %16 = sbr.rel (0) target = $region9
    $region8: #{tpu_custom_call.1} parent=1 // pred_region
      _
    $region9: #{tpu_custom_call.1} parent=1 // pred_fallthru
      _
    // Predicated region
    $region10: #{tpu_custom_call.1} parent=1 // pred_check
      _
    $region11: #{tpu_custom_call.1} parent=1 // pred_check_branch
      %18 = sbr.rel (0) target = $region13
    $region12: #{tpu_custom_call.1} parent=1 // pred_region
      _
    $region13: #{tpu_custom_call.1} parent=1 // pred_fallthru
      _
    // Predicated region
    $region14: #{tpu_custom_call.1} parent=1 // pred_check
      _
    $region15: #{tpu_custom_call.1} parent=1 // pred_check_branch
      %20 = sbr.rel (0) target = $region17
    $region16: #{tpu_custom_call.1} parent=1 // pred_region
      _
    $region17: #{tpu_custom_call.1} parent=1 // pred_fallthru
      _
    %v21 = vld [vmem:[%s0] sm:$0xff]
    %v22 = vld [vmem:[%s1] sm:$0x1]
    %s23 = sld [smem:[#allocation2]]
    %v25 = vlaneseq
    %v26 = vshrl.u32 %v25, 7
    %v27 = vsub.s32 0, %v26
    %v28 = vrot.slane %v22, %v27
    %v30 = vmul.f32 %v21, %v28
    %vm31 = vcmask 80896
    %v32 = vsel %vm31, %v30, 0.0
    %33 = vadd.xlane.f32.xlu0 %v32
    %v34 = vpop.xlane.xlu0 %33
    %v35 = vstv %s23
    %v36 = vadd.f32 %v34, %v35
    %vm37 = vcmask 7168
    %38 = vst.msk [vmem:[%s4] sm:$0xff] %vm37, %v36
    %v39 = vsub.f32 %v36, %v36
    %v40 = vmul.f32 %v39, 1.442695
    %v41 = vpow.pop %v40
    %v42 = vadd.f32 %v41, 0.0
    %v43 = vlog2.pop %v42
    %v44 = vmul.f32 %v43, 0.6931472
    %v45 = vadd.f32 %v36, %v44
    %v46 = vlaneseq
    %v47 = vand.u32 %v46, 127
    %v48 = vld [vmem:[%s2] sm:$0xff]
    %vm49 = vcmp.eq.s32.totalorder %v47, %v48
    %v50 = vsel %vm49, 1, 0
    %v51 = vcvt.s32.f32 %v50
    %v52 = vmul.f32 %v36, %v51
    %v53 = vadd.f32 %v52, 0.0
    %v54 = vsub.f32 %v45, %v53
    %v55 = vsel %vm37, %v54, 0.0
    %v56 = vrot.slane %v55, 4
    %v57 = vadd.f32 %v55, %v56
    %v58 = vrot.slane %v57, 2
    %v59 = vadd.f32 %v57, %v58
    %v60 = vrot.slane %v59, 1
    %v61 = vadd.f32 %v59, %v60
    %v62 = vmul.f32 %v61, 0.125
    %vm63 = vcmask 0
    %64 = vst.msk [vmem:[#allocation3] sm:$0x1] %vm63, %v62
    // Predicated region
    $region18: #{tpu_custom_call.1} parent=1 // pred_check
      _
    $region19: #{tpu_custom_call.1} parent=1 // pred_check_branch
      %66 = sbr.rel (0) target = $region21
    $region20: #{tpu_custom_call.1} parent=1 // pred_region
      _
    $region21: #{tpu_custom_call.1} parent=1 // pred_fallthru
      _
    // Predicated region
    $region22: #{tpu_custom_call.1} parent=1 // pred_check
      _
    $region23: #{tpu_custom_call.1} parent=1 // pred_check_branch
      %68 = sbr.rel (0) target = $region25
    $region24: #{tpu_custom_call.1} parent=1 // pred_region
      %s70 = ssub.s32 16, 16
      %71 = vsyncadd [#allocation4], %s70
      %s73 = sshll.u32 [#allocation3], 4
      %s74 = int_to_ptr.vmem [resolvable:$true] %s73
      %76 = dma.vmem_to_hbm [thread:$0]  %s74, 16, %s5, [#allocation4]
    $region25: #{tpu_custom_call.1} parent=1 // pred_fallthru
      _
    // Predicated region
    $region26: #{tpu_custom_call.1} parent=1 // pred_check
      _
    $region27: #{tpu_custom_call.1} parent=1 // pred_check_branch
      %78 = sbr.rel (0) target = $region29
    $region28: #{tpu_custom_call.1} parent=1 // pred_region
      _
    $region29: #{tpu_custom_call.1} parent=1 // pred_fallthru
      _
    // Predicated region
    $region30: #{tpu_custom_call.1} parent=1 // pred_check
      _
    $region31: #{tpu_custom_call.1} parent=1 // pred_check_branch
      %80 = sbr.rel (0) target = $region33
    $region32: #{tpu_custom_call.1} parent=1 // pred_region
      %81 = dma.done [#allocation4], 16
    $region33: #{tpu_custom_call.1} parent=1 // pred_fallthru
      _
    %82 = vsyncpa [#allocation4], 1

</llo_original>
